<compile_context>
chip_gen: v6e
topology: v6e:2x2x1
jax: 0.10.0
libtpu: 0.0.40
codegen_flags: <defaults>
</compile_context>

<pallas_src>
import numpy as np

import jax
import jax.numpy as jnp
from jax import lax
from jax.experimental import pallas as pl
from jax.experimental.pallas import tpu as pltpu


# ----------------------------------------------------------------------------
# Window / NMS / roi_align glue (data-dependent, small; kept on host)
# ----------------------------------------------------------------------------
def shifted_windows(height, width, win_size):
    shift_y = np.arange(0, height - win_size + 1, win_size // 2)
    shift_x = np.arange(0, width - win_size + 1, win_size // 2)
    sx, sy = np.meshgrid(shift_x, shift_y)
    window = np.stack((sx.ravel(), sy.ravel(), sx.ravel(), sy.ravel()), axis=1).astype(np.float32)
    window[:, 2] = window[:, 0] + win_size - 1
    window[:, 3] = window[:, 1] + win_size - 1
    return window


# TODO(synk): torchvision.ops.nms is a data-dependent greedy algorithm; kept as host NumPy glue.
def nms_numpy(boxes, scores, iou_threshold):
    x1, y1, x2, y2 = boxes[:, 0], boxes[:, 1], boxes[:, 2], boxes[:, 3]
    areas = (x2 - x1) * (y2 - y1)
    order = np.argsort(-scores, kind="stable")
    suppressed = np.zeros(boxes.shape[0], dtype=bool)
    keep = []
    for idx in order:
        if suppressed[idx]:
            continue
        keep.append(int(idx))
        xx1 = np.maximum(x1[idx], x1)
        yy1 = np.maximum(y1[idx], y1)
        xx2 = np.minimum(x2[idx], x2)
        yy2 = np.minimum(y2[idx], y2)
        iw = np.maximum(0.0, xx2 - xx1)
        ih = np.maximum(0.0, yy2 - yy1)
        inter = iw * ih
        iou = inter / (areas[idx] + areas - inter + 1e-12)
        suppressed |= iou > iou_threshold
    return np.asarray(keep, dtype=np.int64)


# TODO(synk): torchvision.ops.roi_align (bilinear, sampling_ratio=-1, aligned=False) kept as host NumPy glue.
def roi_align_numpy(feat, boxes, out_size):
    C, H, W = feat.shape
    P = out_size
    outs = []
    for box in boxes:
        bx1, by1, bx2, by2 = [float(v) for v in box]
        roi_w = max(bx2 - bx1, 1.0)
        roi_h = max(by2 - by1, 1.0)
        bin_w = roi_w / P
        bin_h = roi_h / P
        gw = max(int(np.ceil(roi_w / P)), 1)
        gh = max(int(np.ceil(roi_h / P)), 1)
        ys = (by1 + np.arange(P)[:, None] * bin_h
              + (np.arange(gh)[None, :] + 0.5) * bin_h / gh).reshape(-1)
        xs = (bx1 + np.arange(P)[:, None] * bin_w
              + (np.arange(gw)[None, :] + 0.5) * bin_w / gw).reshape(-1)

        def prep(c, size):
            valid = (c >= -1.0) & (c <= size)
            cc = np.clip(c, 0.0, None)
            low = np.minimum(np.floor(cc).astype(np.int64), size - 1)
            high = np.minimum(low + 1, size - 1)
            frac = np.where(low >= size - 1, 0.0, cc - low)
            return low, high, frac, valid

        yl, yh, fy, vy = prep(ys, H)
        xl, xh, fx, vx = prep(xs, W)
        w1 = (1 - fy)[:, None] * (1 - fx)[None, :]
        w2 = (1 - fy)[:, None] * fx[None, :]
        w3 = fy[:, None] * (1 - fx)[None, :]
        w4 = fy[:, None] * fx[None, :]
        val = (w1 * feat[:, yl][:, :, xl] + w2 * feat[:, yl][:, :, xh]
               + w3 * feat[:, yh][:, :, xl] + w4 * feat[:, yh][:, :, xh])
        val = val * (vy[:, None] & vx[None, :]).astype(np.float32)
        val = val.reshape(C, P, gh, P, gw).mean(axis=(2, 4))
        outs.append(val)
    return np.stack(outs, axis=0).astype(np.float32)


# ----------------------------------------------------------------------------
# Pallas kernel 1: PreNorm LayerNorm   (b, N, d) -> (b, N, d)
#   Tiled over token rows so the DMA pipeline overlaps load/compute/store and
#   the grid can be sharded across cores ("parallel" semantics).
# ----------------------------------------------------------------------------
def layernorm_pallas(x, gamma, beta, eps=1e-5):
    b, n, d = x.shape
    rows = b * n
    # Row tile: big enough to amortize per-step overhead, small enough to keep
    # at least 2 grid steps when possible (megacore on v7x).
    tile = 256 if rows >= 512 else max(8, rows)
    rows_pad = ((rows + tile - 1) // tile) * tile

    x2 = x.reshape(rows, d).astype(jnp.float32)
    if rows_pad != rows:
        x2 = jnp.pad(x2, ((0, rows_pad - rows), (0, 0)))
    g2 = gamma.reshape(1, d).astype(jnp.float32)
    b2 = beta.reshape(1, d).astype(jnp.float32)

    def kernel(x_ref, g_ref, bt_ref, o_ref):
        xv = x_ref[...]
        mu = jnp.mean(xv, axis=-1, keepdims=True)
        xc = xv - mu
        var = jnp.mean(xc * xc, axis=-1, keepdims=True)
        o_ref[...] = xc * lax.rsqrt(var + eps) * g_ref[...] + bt_ref[...]

    out = pl.pallas_call(
        kernel,
        out_shape=jax.ShapeDtypeStruct((rows_pad, d), jnp.float32),
        grid_spec=pltpu.PrefetchScalarGridSpec(
            num_scalar_prefetch=0,
            grid=(rows_pad // tile,),
            in_specs=[
                pl.BlockSpec((tile, d), lambda i: (i, 0)),
                pl.BlockSpec((1, d), lambda i: (0, 0)),
                pl.BlockSpec((1, d), lambda i: (0, 0)),
            ],
            out_specs=pl.BlockSpec((tile, d), lambda i: (i, 0)),
        ),
        compiler_params=pltpu.CompilerParams(dimension_semantics=("parallel",)),
    )(x2, g2, b2)
    return out[:rows].reshape(b, n, d)


# ----------------------------------------------------------------------------
# Pallas kernel 2: channel-entropy reduction  (b, c, h, w) -> (b, h, w)
#   Spatial dims flattened onto the lane axis; the whole (tiny) batch is one
#   grid step.
# ----------------------------------------------------------------------------
def entropy_pallas(prob):
    b, c, h, w = prob.shape
    hw = h * w
    p3 = prob.reshape(b, c, hw).astype(jnp.float32)

    def kernel(p_ref, o_ref):
        p = p_ref[...]                                            # (b, c, hw)
        o_ref[...] = -jnp.sum(p * jnp.log2(p + 1e-10), axis=1)    # (b, hw)

    ent = pl.pallas_call(
        kernel,
        out_shape=jax.ShapeDtypeStruct((b, hw), jnp.float32),
        grid_spec=pltpu.PrefetchScalarGridSpec(
            num_scalar_prefetch=0,
            grid=(1,),
            in_specs=[pl.BlockSpec((b, c, hw), lambda i: (0, 0, 0))],
            out_specs=pl.BlockSpec((b, hw), lambda i: (0, 0)),
        ),
    )(p3)
    return ent.reshape(b, h, w)


# ----------------------------------------------------------------------------
# Pallas kernel 3: fused multi-window, multi-head attention
#   xw (M, n_tok, dim) -> out (M, n_tok, dim)
#   Processes TM windows per grid step:
#     qkv = x @ Wqkv  (one (TM*n_tok, dim) MXU matmul)
#     head-batched scores/softmax/PV via 3-D einsums with batch = heads*TM
#     output projection over all TM*n_tok rows at once.
#   Matmul operands are bf16 (f32 accumulation); softmax math stays f32.
#   The 1/sqrt(dim_head) softmax scale is folded into the q columns of Wqkv
#   once on the host instead of scaling every (n_tok, n_tok) score tile.
# ----------------------------------------------------------------------------
def window_attention_pallas(xw, w_qkv, w_out, b_out, heads, dim_head):
    M, n_tok, dim = xw.shape
    inner = heads * dim_head
    dh = dim_head
    scale = float(dim_head) ** -0.5

    # Fold the softmax scale into the q columns of Wqkv.
    w_qkv = jnp.concatenate([w_qkv[:, :inner] * scale, w_qkv[:, inner:]], axis=1)

    # Window-tile size: batch up to 8 windows per grid step, but keep the grid
    # length >= 2 when possible so both v7x TensorCores get work.
    tm = max(1, min(8, (M + 1) // 2))
    m_pad = ((M + tm - 1) // tm) * tm
    if m_pad != M:
        xw = jnp.pad(xw, ((0, m_pad - M), (0, 0), (0, 0)))

    xw_b = xw.astype(jnp.bfloat16)
    w_qkv_b = w_qkv.astype(jnp.bfloat16)
    w_out_b = w_out.astype(jnp.bfloat16)
    b_out_f = b_out.reshape(1, dim).astype(jnp.float32)

    def kernel(x_ref, wqkv_ref, wout_ref, bout_ref, o_ref):
        # fused QKV projection over all tm*n_tok token rows (single MXU matmul)
        x2d = x_ref[...].reshape(tm * n_tok, dim)                           # bf16
        qkv = jnp.dot(x2d, wqkv_ref[...],
                      preferred_element_type=jnp.float32)                   # (tm*n, 3*inner)
        qkv = qkv.reshape(tm, n_tok, 3 * inner)

        # head-batched q/k/v: (heads*tm, n_tok, dim_head)
        q = jnp.concatenate([qkv[:, :, h * dh:(h + 1) * dh]
                             for h in range(heads)], axis=0)
        k = jnp.concatenate([qkv[:, :, inner + h * dh: inner + (h + 1) * dh]
                             for h in range(heads)], axis=0)
        v = jnp.concatenate([qkv[:, :, 2 * inner + h * dh: 2 * inner + (h + 1) * dh]
                             for h in range(heads)], axis=0)

        dots = jnp.einsum('bqd,bkd->bqk', q.astype(jnp.bfloat16), k.astype(jnp.bfloat16),
                          preferred_element_type=jnp.float32)               # (heads*tm, n, n)
        dots = dots - jnp.max(dots, axis=-1, keepdims=True)
        p = jnp.exp(dots)                                                   # f32 softmax (EUP)
        attn = p * pl.reciprocal(jnp.sum(p, axis=-1, keepdims=True), approx=True)

        ov = jnp.einsum('bqk,bkd->bqd', attn.astype(jnp.bfloat16), v.astype(jnp.bfloat16),
                        preferred_element_type=jnp.float32)                 # (heads*tm, n, dh)
        out_cat = jnp.concatenate([ov[h * tm:(h + 1) * tm]
                                   for h in range(heads)], axis=-1)         # (tm, n, inner)

        out = jnp.dot(out_cat.reshape(tm * n_tok, inner).astype(jnp.bfloat16),
                      wout_ref[...], preferred_element_type=jnp.float32) + bout_ref[...]
        # TODO(synk): lane-dense transposed (dim, tm*n_tok) output slab skipped — the
        # in-kernel transpose of a 32-lane-wide tile is not reliably lowerable; the
        # natural (tm, n_tok, dim) store is kept instead.
        o_ref[...] = out.reshape(tm, n_tok, dim).astype(o_ref.dtype)

    out = pl.pallas_call(
        kernel,
        out_shape=jax.ShapeDtypeStruct((m_pad, n_tok, dim), jnp.float32),
        grid_spec=pltpu.PrefetchScalarGridSpec(
            num_scalar_prefetch=0,
            grid=(m_pad // tm,),
            in_specs=[
                pl.BlockSpec((tm, n_tok, dim), lambda m: (m, 0, 0)),
                pl.BlockSpec((dim, 3 * inner), lambda m: (0, 0)),
                pl.BlockSpec((inner, dim), lambda m: (0, 0)),
                pl.BlockSpec((1, dim), lambda m: (0, 0)),
            ],
            out_specs=pl.BlockSpec((tm, n_tok, dim), lambda m: (m, 0, 0)),
        ),
        compiler_params=pltpu.CompilerParams(dimension_semantics=("parallel",)),
    )(xw_b, w_qkv_b, w_out_b, b_out_f)
    return out[:M]


# ----------------------------------------------------------------------------
# Attention_local forward (the `fn` wrapped by PreNorm)
# ----------------------------------------------------------------------------
def attention_local_forward(x, prob, params, cfg):
    b, c, h, w = prob.shape
    _, N, d = x.shape
    ws = cfg["win_size"]
    heads = cfg["heads"]
    dim_head = cfg["dim_head"]
    H2, W2 = 2 * h, 2 * w
    assert N == H2 * W2

    # entropy over channels (Pallas reduction kernel, lane-dense layout)
    entropy = entropy_pallas(prob)                                # (b, h, w)

    # x_2d : 'b (h w) d -> b d h w'
    x_2d = jnp.transpose(x.reshape(b, H2, W2, d), (0, 3, 1, 2))   # (b, d, 2h, 2w)

    # FixCNN: ones kernel (ws//2 x ws//2), stride ws//4, then normalize
    kk = ws // 2
    ss = kk // 2
    win_score = lax.conv_general_dilated(
        entropy[:, None].astype(jnp.float32),
        jnp.ones((1, 1, kk, kk), jnp.float32),
        window_strides=(ss, ss),
        padding="VALID",
    )
    win_score = win_score.reshape(b, -1) / float(ws // 2 * ws // 2)

    window = shifted_windows(cfg["img_height"], cfg["img_width"], ws)  # (Mw, 4)
    keep_num = min(int(0.7 * (H2 // ws) ** 2), 96)

    win_score_np = np.asarray(jax.device_get(win_score))
    x_2d_np = np.asarray(jax.device_get(x_2d))

    # gather the kept windows of every batch element
    all_feats = []
    metas = []                                   # (batch_index, sx, sy) per window
    for i in range(b):
        keep = nms_numpy(window, win_score_np[i], 0.2)[:keep_num]
        keep_window = window[keep]                                     # (m, 4)
        feats = roi_align_numpy(x_2d_np[i], keep_window, ws)           # (m, d, ws, ws)
        xi = np.transpose(feats, (0, 2, 3, 1)).reshape(feats.shape[0], ws * ws, d)
        all_feats.append(xi)
        for j in range(keep_window.shape[0]):
            metas.append((i, int(keep_window[j, 0]), int(keep_window[j, 1])))

    xw = jnp.asarray(np.concatenate(all_feats, axis=0), dtype=jnp.float32)  # (M, n, d)

    # Pallas fused attention over all kept windows (TM windows per grid step)
    out_tok = window_attention_pallas(xw, params["w_qkv"], params["w_out"],
                                      params["b_out"], heads, dim_head)
    out_tok = np.asarray(jax.device_get(out_tok))                      # (M, n, d)
    out_2d = np.transpose(out_tok.reshape(-1, ws, ws, d), (0, 3, 1, 2))  # (M, d, ws, ws)

    # TODO(synk): scatter-add of per-window outputs back onto the image grid kept on host.
    outx_2d = np.zeros((b, d, H2, W2), np.float32)
    win_cunt = np.zeros((b, H2, W2), np.float32)
    for idx, (i, sx, sy) in enumerate(metas):
        outx_2d[i, :, sy:sy + ws, sx:sx + ws] += out_2d[idx]
        win_cunt[i, sy:sy + ws, sx:sx + ws] += 1.0

    outx_2d = outx_2d / (win_cunt[:, None] + 1e-10)
    outx = np.transpose(outx_2d, (0, 2, 3, 1)).reshape(b, N, d)         # 'b d h w -> b (h w) d'
    return x + jnp.asarray(outx)


# ----------------------------------------------------------------------------
# PreNorm forward: fn(norm(x), prob=prob)
# ----------------------------------------------------------------------------
def prenorm_attention_local_forward(x, prob, params, cfg):
    x_n = layernorm_pallas(x, params["ln_gamma"], params["ln_beta"])
    return attention_local_forward(x_n, prob, params, cfg)


# ----------------------------------------------------------------------------
if __name__ == "__main__":
    # small config consistent with the module:
    #   prob (b, c, h, w); x (b, (2h)(2w), dim); image = 2h x 2w
    b, c, h, w = 2, 4, 8, 8
    dim, heads, dim_head, win_size = 32, 2, 8, 8
    img_h, img_w = 2 * h, 2 * w
    N = (2 * h) * (2 * w)
    inner = heads * dim_head

    key = jax.random.PRNGKey(0)
    k1, k2, k3, k4, k5 = jax.random.split(key, 5)

    x = jax.random.normal(k1, (b, N, dim), dtype=jnp.float32)
    prob_raw = jax.random.uniform(k2, (b, c, h, w), dtype=jnp.float32,
                                  minval=1e-3, maxval=1.0)
    prob = prob_raw / jnp.sum(prob_raw, axis=1, keepdims=True)

    params = {
        # PreNorm LayerNorm (nn.LayerNorm default init: weight=1, bias=0)
        "ln_gamma": jnp.ones((dim,), jnp.float32),
        "ln_beta": jnp.zeros((dim,), jnp.float32),
        # to_qkv: Linear(dim, 3*inner, bias=False) -> stored transposed (dim, 3*inner)
        "w_qkv": 0.05 * jax.random.normal(k3, (dim, 3 * inner), dtype=jnp.float32),
        # to_out: Linear(inner, dim) -> stored transposed (inner, dim) + bias
        "w_out": 0.05 * jax.random.normal(k4, (inner, dim), dtype=jnp.float32),
        "b_out": 0.05 * jax.random.normal(k5, (1, dim), dtype=jnp.float32),
    }

    cfg = dict(win_size=win_size, heads=heads, dim_head=dim_head,
               img_height=img_h, img_width=img_w)

    out = prenorm_attention_local_forward(x, prob, params, cfg)
    out = jax.block_until_ready(out)
    assert out.shape == (b, N, dim) and out.dtype == jnp.float32
    print("KERNEL_OK")
</pallas_src>

<mosaic_0001>
module attributes {stable_mosaic.version = 11 : i64} {
  func.func @kernel(%arg0: i32, %arg1: memref<256x32xf32, #tpu.memory_space<vmem>>, %arg2: memref<1x32xf32, #tpu.memory_space<vmem>>, %arg3: memref<1x32xf32, #tpu.memory_space<vmem>>, %arg4: memref<256x32xf32, #tpu.memory_space<vmem>>) attributes {dimension_semantics = [#tpu.dimension_semantics<parallel>], iteration_bounds = array<i64: 2>, scalar_prefetch = 0 : i64, scratch_operands = 0 : i64, tpu.core_type = #tpu.core_type<tc>, window_params = [{transform_indices = @transform_0, window_bounds = array<i64: 256, 32>}, {pipeline_mode = #tpu.pipeline_mode<synchronous>, transform_indices = @transform_1, window_bounds = array<i64: 1, 32>}, {pipeline_mode = #tpu.pipeline_mode<synchronous>, transform_indices = @transform_2, window_bounds = array<i64: 1, 32>}, {transform_indices = @transform_3, window_bounds = array<i64: 256, 32>}]} {
    %c0 = arith.constant 0 : index
    %c0_0 = arith.constant 0 : index
    %0 = vector.load %arg1[%c0, %c0_0] : memref<256x32xf32, #tpu.memory_space<vmem>>, vector<256x32xf32>
    %cst = arith.constant dense<0.000000e+00> : vector<256xf32>
    %1 = vector.multi_reduction <add>, %0, %cst [1] : vector<256x32xf32> to vector<256xf32>
    %2 = vector.shape_cast %1 : vector<256xf32> to vector<256x1xf32>
    %cst_1 = arith.constant 3.200000e+01 : f32
    %3 = vector.broadcast %cst_1 : f32 to vector<256x1xf32>
    %4 = arith.divf %2, %3 : vector<256x1xf32>
    %5 = vector.broadcast %4 : vector<256x1xf32> to vector<256x32xf32>
    %6 = arith.subf %0, %5 : vector<256x32xf32>
    %7 = arith.mulf %6, %6 : vector<256x32xf32>
    %cst_2 = arith.constant dense<0.000000e+00> : vector<256xf32>
    %8 = vector.multi_reduction <add>, %7, %cst_2 [1] : vector<256x32xf32> to vector<256xf32>
    %9 = vector.shape_cast %8 : vector<256xf32> to vector<256x1xf32>
    %cst_3 = arith.constant 3.200000e+01 : f32
    %10 = vector.broadcast %cst_3 : f32 to vector<256x1xf32>
    %11 = arith.divf %9, %10 : vector<256x1xf32>
    %cst_4 = arith.constant 9.99999974E-6 : f32
    %12 = vector.broadcast %cst_4 : f32 to vector<256x1xf32>
    %13 = arith.addf %11, %12 : vector<256x1xf32>
    %14 = math.rsqrt %13 : vector<256x1xf32>
    %15 = vector.broadcast %14 : vector<256x1xf32> to vector<256x32xf32>
    %16 = arith.mulf %6, %15 : vector<256x32xf32>
    %c0_5 = arith.constant 0 : index
    %c0_6 = arith.constant 0 : index
    %17 = vector.load %arg2[%c0_5, %c0_6] : memref<1x32xf32, #tpu.memory_space<vmem>>, vector<1x32xf32>
    %18 = vector.broadcast %17 : vector<1x32xf32> to vector<256x32xf32>
    %19 = arith.mulf %16, %18 : vector<256x32xf32>
    %c0_7 = arith.constant 0 : index
    %c0_8 = arith.constant 0 : index
    %20 = vector.load %arg3[%c0_7, %c0_8] : memref<1x32xf32, #tpu.memory_space<vmem>>, vector<1x32xf32>
    %21 = vector.broadcast %20 : vector<1x32xf32> to vector<256x32xf32>
    %22 = arith.addf %19, %21 : vector<256x32xf32>
    %c0_9 = arith.constant 0 : index
    %c0_10 = arith.constant 0 : index
    %23 = vector.load %arg4[%c0_9, %c0_10] : memref<256x32xf32, #tpu.memory_space<vmem>>, vector<256x32xf32>
    tpu.vector_store %arg4[%c0_9, %c0_10], %22 {strides = array<i32>} : memref<256x32xf32, #tpu.memory_space<vmem>>, vector<256x32xf32>,
    return
  }
  func.func @transform_0(%arg0: i32) -> (i32, i32) {
    %c0_i32 = arith.constant 0 : i32
    %c0_i32_0 = arith.constant 0 : i32
    return %arg0, %c0_i32 : i32, i32
  }
  func.func @transform_1(%arg0: i32) -> (i32, i32) {
    %c0_i32 = arith.constant 0 : i32
    %c0_i32_0 = arith.constant 0 : i32
    %c0_i32_1 = arith.constant 0 : i32
    return %c0_i32, %c0_i32_0 : i32, i32
  }
  func.func @transform_2(%arg0: i32) -> (i32, i32) {
    %c0_i32 = arith.constant 0 : i32
    %c0_i32_0 = arith.constant 0 : i32
    %c0_i32_1 = arith.constant 0 : i32
    return %c0_i32, %c0_i32_0 : i32, i32
  }
  func.func @transform_3(%arg0: i32) -> (i32, i32) {
    %c0_i32 = arith.constant 0 : i32
    %c0_i32_0 = arith.constant 0 : i32
    return %arg0, %c0_i32 : i32, i32
  }
}

</mosaic_0001>

<llo_original>
// kernel: tpu_custom_call.1
$region0: #{tpu_custom_call.1}
  #allocation0 [shape = 'u32[]', space=smem, size = 0x4, offset = 0x4, fixed_abs, tag = 'smem constant byte address 0x4 - core index']
  #allocation1 [shape = 'u32[144,128]{1,0:T(1,128)}', space=vmem, size = 0x12000, scoped, tag = 'internal scratch']
  %s0 = inlined_call_operand.vmem [shape: f32[512,32], index: 0, kind: input, shape index: {}]
  %s1 = inlined_call_operand.vmem [shape: f32[1,32], index: 1, kind: input, shape index: {}]
  %s2 = inlined_call_operand.vmem [shape: f32[1,32], index: 2, kind: input, shape index: {}]
  %s3 = inlined_call_operand.vmem [shape: f32[512,32], index: 3, kind: output, shape index: {}]
  %s4 = sld [smem:[#allocation0]]
  $region45: #{tpu_custom_call.1} parent=0
    _
  %s6 = ssub.s32 1, %s4
  %s7 = scalar_select 0, %s6, %s4
  loop: start=0, step=1, limit=4
  $region2: #{tpu_custom_call.1} parent=0 // loop_pre_header
    _
  $region3: #{tpu_custom_call.1} parent=0 // loop_header
    %s9 = sphi 0, %s13
    %p10 = scmp.ge.s32.totalorder %s9, 4
    %s19 = sphi 0, %s21
    %s22 = sphi 0, %s19
    %s23 = sphi 0, %s22
    %s39 = sphi 0, %s23
    %s43 = sphi 0, %s43
    %s45 = sphi 0, %s43
    %s46 = sphi 0, %s45
    %s60 = sphi 0, %s46
    %s64 = sphi 0, %s64
    %s66 = sphi 0, %s64
    %s67 = sphi 0, %s66
    %s81 = sphi 0, %s67
    %s87 = sphi 0, %s89
    %s90 = sphi 0, %s87
    %s91 = sphi 0, %s90
    %s107 = sphi 0, %s91
  $region4: #{tpu_custom_call.1} parent=0 // loop_header_branch
    %12 = sbr.rel (%p10) target = $region8
  $region5: #{tpu_custom_call.1} parent=0 // loop_body
    %s14 = ssub.s32 %s9, 1
    %s15 = ssub.s32 %s9, 2
    %s16 = sadd.s32 %s9, 1
    %s17 = ssub.s32 %s9, %s16
    %p18 = scmp.eq.s32.totalorder %s17, 0
    %s20 = sadd.s32 %s19, 1
    %s21 = scalar_select %p18, %s19, %s20
    %p24 = pneg %p18
    %p25 = scmp.eq.s32.totalorder %s9, 1
    %p26 = por %p24, %p25
    %p27 = scmp.ne.s32.totalorder %s19, %s22
    %p28 = scmp.eq.s32.totalorder %s9, 0
    %p29 = por %p27, %p28
    %p30 = scmp.ne.s32.totalorder %s19, %s22
    %p31 = scmp.eq.s32.totalorder %s14, 1
    %p32 = por %p30, %p31
    %p33 = scmp.ne.s32.totalorder %s22, %s23
    %p34 = scmp.eq.s32.totalorder %s14, 0
    %p35 = por %p33, %p34
    %p36 = scmp.ne.s32.totalorder %s22, %s23
    %p37 = scmp.eq.s32.totalorder %s15, 1
    %p38 = por %p36, %p37
    %p40 = scmp.ne.s32.totalorder %s23, %s39
    %p41 = scmp.eq.s32.totalorder %s15, 0
    %p42 = por %p40, %p41
    %s44 = sadd.s32 %s43, 1
    %p47 = scmp.eq.s32.totalorder %s9, 1
    %p48 = scmp.ne.s32.totalorder %s43, %s45
    %p49 = scmp.eq.s32.totalorder %s9, 0
    %p50 = por %p48, %p49
    %p51 = scmp.ne.s32.totalorder %s43, %s45
    %p52 = scmp.eq.s32.totalorder %s14, 1
    %p53 = por %p51, %p52
    %p54 = scmp.ne.s32.totalorder %s45, %s46
    %p55 = scmp.eq.s32.totalorder %s14, 0
    %p56 = por %p54, %p55
    %p57 = scmp.ne.s32.totalorder %s45, %s46
    %p58 = scmp.eq.s32.totalorder %s15, 1
    %p59 = por %p57, %p58
    %p61 = scmp.ne.s32.totalorder %s46, %s60
    %p62 = scmp.eq.s32.totalorder %s15, 0
    %p63 = por %p61, %p62
    %s65 = sadd.s32 %s64, 1
    %p68 = scmp.eq.s32.totalorder %s9, 1
    %p69 = scmp.ne.s32.totalorder %s64, %s66
    %p70 = scmp.eq.s32.totalorder %s9, 0
    %p71 = por %p69, %p70
    %p72 = scmp.ne.s32.totalorder %s64, %s66
    %p73 = scmp.eq.s32.totalorder %s14, 1
    %p74 = por %p72, %p73
    %p75 = scmp.ne.s32.totalorder %s66, %s67
    %p76 = scmp.eq.s32.totalorder %s14, 0
    %p77 = por %p75, %p76
    %p78 = scmp.ne.s32.totalorder %s66, %s67
    %p79 = scmp.eq.s32.totalorder %s15, 1
    %p80 = por %p78, %p79
    %p82 = scmp.ne.s32.totalorder %s67, %s81
    %p83 = scmp.eq.s32.totalorder %s15, 0
    %p84 = por %p82, %p83
    %s85 = ssub.s32 %s9, %s16
    %p86 = scmp.eq.s32.totalorder %s85, 0
    %s88 = sadd.s32 %s87, 1
    %s89 = scalar_select %p86, %s87, %s88
    %p92 = pneg %p86
    %p93 = scmp.eq.s32.totalorder %s9, 1
    %p94 = por %p92, %p93
    %p95 = scmp.ne.s32.totalorder %s87, %s90
    %p96 = scmp.eq.s32.totalorder %s9, 0
    %p97 = por %p95, %p96
    %p98 = scmp.ne.s32.totalorder %s87, %s90
    %p99 = scmp.eq.s32.totalorder %s14, 1
    %p100 = por %p98, %p99
    %p101 = scmp.ne.s32.totalorder %s90, %s91
    %p102 = scmp.eq.s32.totalorder %s14, 0
    %p103 = por %p101, %p102
    %p104 = scmp.ne.s32.totalorder %s90, %s91
    %p105 = scmp.eq.s32.totalorder %s15, 1
    %p106 = por %p104, %p105
    %p108 = scmp.ne.s32.totalorder %s91, %s107
    %p109 = scmp.eq.s32.totalorder %s15, 0
    %p110 = por %p108, %p109
    %p111 = scmp.le.s32.totalorder 1, %s9
    %p112 = scmp.lt.s32.totalorder %s9, 3
    %p113 = pnand %p111, %p112
    %p114 = pneg %p113
    // Predicated region
    $region9: #{tpu_custom_call.1} parent=5 // pred_check
      _
    $region10: #{tpu_custom_call.1} parent=5 // pred_check_branch
      %116 = sbr.rel (%p113) target = $region12
    $region11: #{tpu_custom_call.1} parent=5 // pred_region
      %s117 = ssub.s32 %s9, 1
      // Predicated region
      $region13: #{tpu_custom_call.1} parent=11 // pred_check
        %p118 = pneg %p56
      $region14: #{tpu_custom_call.1} parent=11 // pred_check_branch
        %120 = sbr.rel (%p118) target = $region16
      $region15: #{tpu_custom_call.1} parent=11 // pred_region
        _
      $region16: #{tpu_custom_call.1} parent=11 // pred_fallthru
        _
      // Predicated region
      $region17: #{tpu_custom_call.1} parent=11 // pred_check
        %p121 = pneg %p77
      $region18: #{tpu_custom_call.1} parent=11 // pred_check_branch
        %123 = sbr.rel (%p121) target = $region20
      $region19: #{tpu_custom_call.1} parent=11 // pred_region
        _
      $region20: #{tpu_custom_call.1} parent=11 // pred_fallthru
        _
    $region12: #{tpu_custom_call.1} parent=5 // pred_fallthru
      _
    %p124 = scmp.lt.s32.totalorder %s9, 2
    // Predicated region
    $region21: #{tpu_custom_call.1} parent=5 // pred_check
      %p125 = pneg %p124
    $region22: #{tpu_custom_call.1} parent=5 // pred_check_branch
      %127 = sbr.rel (%p125) target = $region24
    $region23: #{tpu_custom_call.1} parent=5 // pred_region
      // Predicated region
      $region25: #{tpu_custom_call.1} parent=23 // pred_check
        %p128 = pneg %p29
      $region26: #{tpu_custom_call.1} parent=23 // pred_check_branch
        %130 = sbr.rel (%p128) target = $region28
      $region27: #{tpu_custom_call.1} parent=23 // pred_region
        %s131 = smul.u32 32, %s9
        %p132 = scmp.lt.s32.totalorder %s131, 63
        %s133 = scalar_select %p132, %s131, 63
        %s134 = smul.addr %s133, 8
        %s135 = scalar_lea.vmem %s0, %s134
        %s136 = smul.u32 32, %s9
      $region28: #{tpu_custom_call.1} parent=23 // pred_fallthru
        _
    $region24: #{tpu_custom_call.1} parent=5 // pred_fallthru
      _
    %p137 = scmp.le.s32.totalorder 1, %s9
    %p138 = scmp.lt.s32.totalorder %s9, 3
    %p139 = pnand %p137, %p138
    %p140 = pneg %p139
    // Predicated region
    $region29: #{tpu_custom_call.1} parent=5 // pred_check
      _
    $region30: #{tpu_custom_call.1} parent=5 // pred_check_branch
      %142 = sbr.rel (%p139) target = $region32
    $region31: #{tpu_custom_call.1} parent=5 // pred_region
      %s143 = ssub.s32 %s9, 1
      %s144 = smul.u32 32, %s14
      %p145 = scmp.lt.s32.totalorder %s144, 63
      %s146 = scalar_select %p145, %s144, 63
      %s147 = smul.addr %s146, 8
      %s148 = scalar_lea.vmem %s0, %s147
      %p149 = pneg %p35
      %p150 = pneg %p32
      %p151 = pneg %p56
      %p152 = pneg %p53
      %p153 = pneg %p77
      %p154 = pneg %p74
      %p155 = pneg %p103
      %p156 = pneg %p100
      %s157 = smul.u32 32, %s14
      %p158 = scmp.lt.s32.totalorder %s157, 63
      %s159 = scalar_select %p158, %s157, 63
      %s160 = smul.addr %s159, 8
      %s161 = scalar_lea.vmem %s3, %s160
      %s162 = smul.u32 32, %s14
      %p163 = scmp.lt.s32.totalorder %s162, 63
      %s164 = scalar_select %p163, %s162, 63
      %s165 = smul.addr %s164, 8
      %s166 = scalar_lea.vmem %s0, %s165
      %s167 = smul.u32 32, %s14
      %s168 = smul.u32 32, %s14
      %p169 = scmp.lt.s32.totalorder %s168, 63
      %s170 = scalar_select %p169, %s168, 63
      %s171 = smul.addr %s170, 8
      %s172 = scalar_lea.vmem %s3, %s171
      %s173 = smul.u32 32, %s14
      %v174 = vld [vmem:[%s166] sm:$0xff]
      %v175 = vld [vmem:[%s166 + $0x8] sm:$0xff]
      %v176 = vld [vmem:[%s166 + $0x10] sm:$0xff]
      %v177 = vld [vmem:[%s166 + $0x18] sm:$0xff]
      %v178 = vld [vmem:[%s166 + $0x20] sm:$0xff]
      %v179 = vld [vmem:[%s166 + $0x28] sm:$0xff]
      %v180 = vld [vmem:[%s166 + $0x30] sm:$0xff]
      %v181 = vld [vmem:[%s166 + $0x38] sm:$0xff]
      %v182 = vld [vmem:[%s166 + $0x40] sm:$0xff]
      %v183 = vld [vmem:[%s166 + $0x48] sm:$0xff]
      %v184 = vld [vmem:[%s166 + $0x50] sm:$0xff]
      %v185 = vld [vmem:[%s166 + $0x58] sm:$0xff]
      %v186 = vld [vmem:[%s166 + $0x60] sm:$0xff]
      %v187 = vld [vmem:[%s166 + $0x68] sm:$0xff]
      %v188 = vld [vmem:[%s166 + $0x70] sm:$0xff]
      %v189 = vld [vmem:[%s166 + $0x78] sm:$0xff]
      %v190 = vld [vmem:[%s166 + $0x80] sm:$0xff]
      %v191 = vld [vmem:[%s166 + $0x88] sm:$0xff]
      %v192 = vld [vmem:[%s166 + $0x90] sm:$0xff]
      %v193 = vld [vmem:[%s166 + $0x98] sm:$0xff]
      %v194 = vld [vmem:[%s166 + $0xa0] sm:$0xff]
      %v195 = vld [vmem:[%s166 + $0xa8] sm:$0xff]
      %v196 = vld [vmem:[%s166 + $0xb0] sm:$0xff]
      %v197 = vld [vmem:[%s166 + $0xb8] sm:$0xff]
      %v198 = vld [vmem:[%s166 + $0xc0] sm:$0xff]
      %v199 = vld [vmem:[%s166 + $0xc8] sm:$0xff]
      %v200 = vld [vmem:[%s166 + $0xd0] sm:$0xff]
      %v201 = vld [vmem:[%s166 + $0xd8] sm:$0xff]
      %v202 = vld [vmem:[%s166 + $0xe0] sm:$0xff]
      %v203 = vld [vmem:[%s166 + $0xe8] sm:$0xff]
      %v204 = vld [vmem:[%s166 + $0xf0] sm:$0xff]
      %v205 = vld [vmem:[%s166 + $0xf8] sm:$0xff]
      %vm206 = vcmask 261120
      %v207 = vsel %vm206, %v174, 0.0
      %208 = vadd.xlane.f32.xlu0 %v207
      %v209 = vpop.xlane.xlu0 %208
      %v210 = vsel %vm206, %v175, 0.0
      %211 = vadd.xlane.f32.xlu0 %v210
      %v212 = vpop.xlane.xlu0 %211
      %v213 = vsel %vm206, %v176, 0.0
      %214 = vadd.xlane.f32.xlu0 %v213
      %v215 = vpop.xlane.xlu0 %214
      %v216 = vsel %vm206, %v177, 0.0
      %217 = vadd.xlane.f32.xlu0 %v216
      %v218 = vpop.xlane.xlu0 %217
      %v219 = vsel %vm206, %v178, 0.0
      %220 = vadd.xlane.f32.xlu0 %v219
      %v221 = vpop.xlane.xlu0 %220
      %v222 = vsel %vm206, %v179, 0.0
      %223 = vadd.xlane.f32.xlu0 %v222
      %v224 = vpop.xlane.xlu0 %223
      %v225 = vsel %vm206, %v180, 0.0
      %226 = vadd.xlane.f32.xlu0 %v225
      %v227 = vpop.xlane.xlu0 %226
      %v228 = vsel %vm206, %v181, 0.0
      %229 = vadd.xlane.f32.xlu0 %v228
      %v230 = vpop.xlane.xlu0 %229
      %v231 = vsel %vm206, %v182, 0.0
      %232 = vadd.xlane.f32.xlu0 %v231
      %v233 = vpop.xlane.xlu0 %232
      %v234 = vsel %vm206, %v183, 0.0
      %235 = vadd.xlane.f32.xlu0 %v234
      %v236 = vpop.xlane.xlu0 %235
      %v237 = vsel %vm206, %v184, 0.0
      %238 = vadd.xlane.f32.xlu0 %v237
      %v239 = vpop.xlane.xlu0 %238
      %v240 = vsel %vm206, %v185, 0.0
      %241 = vadd.xlane.f32.xlu0 %v240
      %v242 = vpop.xlane.xlu0 %241
      %v243 = vsel %vm206, %v186, 0.0
      %244 = vadd.xlane.f32.xlu0 %v243
      %v245 = vpop.xlane.xlu0 %244
      %v246 = vsel %vm206, %v187, 0.0
      %247 = vadd.xlane.f32.xlu0 %v246
      %v248 = vpop.xlane.xlu0 %247
      %v249 = vsel %vm206, %v188, 0.0
      %250 = vadd.xlane.f32.xlu0 %v249
      %v251 = vpop.xlane.xlu0 %250
      %v252 = vsel %vm206, %v189, 0.0
      %253 = vadd.xlane.f32.xlu0 %v252
      %v254 = vpop.xlane.xlu0 %253
      %v255 = vsel %vm206, %v190, 0.0
      %256 = vadd.xlane.f32.xlu0 %v255
      %v257 = vpop.xlane.xlu0 %256
      %v258 = vsel %vm206, %v191, 0.0
      %259 = vadd.xlane.f32.xlu0 %v258
      %v260 = vpop.xlane.xlu0 %259
      %v261 = vsel %vm206, %v192, 0.0
      %262 = vadd.xlane.f32.xlu0 %v261
      %v263 = vpop.xlane.xlu0 %262
      %v264 = vsel %vm206, %v193, 0.0
      %265 = vadd.xlane.f32.xlu0 %v264
      %v266 = vpop.xlane.xlu0 %265
      %v267 = vsel %vm206, %v194, 0.0
      %268 = vadd.xlane.f32.xlu0 %v267
      %v269 = vpop.xlane.xlu0 %268
      %v270 = vsel %vm206, %v195, 0.0
      %271 = vadd.xlane.f32.xlu0 %v270
      %v272 = vpop.xlane.xlu0 %271
      %v273 = vsel %vm206, %v196, 0.0
      %274 = vadd.xlane.f32.xlu0 %v273
      %v275 = vpop.xlane.xlu0 %274
      %v276 = vsel %vm206, %v197, 0.0
      %277 = vadd.xlane.f32.xlu0 %v276
      %v278 = vpop.xlane.xlu0 %277
      %v279 = vsel %vm206, %v198, 0.0
      %280 = vadd.xlane.f32.xlu0 %v279
      %v281 = vpop.xlane.xlu0 %280
      %v282 = vsel %vm206, %v199, 0.0
      %283 = vadd.xlane.f32.xlu0 %v282
      %v284 = vpop.xlane.xlu0 %283
      %v285 = vsel %vm206, %v200, 0.0
      %286 = vadd.xlane.f32.xlu0 %v285
      %v287 = vpop.xlane.xlu0 %286
      %v288 = vsel %vm206, %v201, 0.0
      %289 = vadd.xlane.f32.xlu0 %v288
      %v290 = vpop.xlane.xlu0 %289
      %v291 = vsel %vm206, %v202, 0.0
      %292 = vadd.xlane.f32.xlu0 %v291
      %v293 = vpop.xlane.xlu0 %292
      %v294 = vsel %vm206, %v203, 0.0
      %295 = vadd.xlane.f32.xlu0 %v294
      %v296 = vpop.xlane.xlu0 %295
      %v297 = vsel %vm206, %v204, 0.0
      %298 = vadd.xlane.f32.xlu0 %v297
      %v299 = vpop.xlane.xlu0 %298
      %v300 = vsel %vm206, %v205, 0.0
      %301 = vadd.xlane.f32.xlu0 %v300
      %v302 = vpop.xlane.xlu0 %301
      %v303 = vrcp.pop 32.0
      %v304 = vmul.f32 %v209, %v303
      %v305 = vmul.f32 %v212, %v303
      %v306 = vmul.f32 %v215, %v303
      %v307 = vmul.f32 %v218, %v303
      %v308 = vmul.f32 %v221, %v303
      %v309 = vmul.f32 %v224, %v303
      %v310 = vmul.f32 %v227, %v303
      %v311 = vmul.f32 %v230, %v303
      %v312 = vmul.f32 %v233, %v303
      %v313 = vmul.f32 %v236, %v303
      %v314 = vmul.f32 %v239, %v303
      %v315 = vmul.f32 %v242, %v303
      %v316 = vmul.f32 %v245, %v303
      %v317 = vmul.f32 %v248, %v303
      %v318 = vmul.f32 %v251, %v303
      %v319 = vmul.f32 %v254, %v303
      %v320 = vmul.f32 %v257, %v303
      %v321 = vmul.f32 %v260, %v303
      %v322 = vmul.f32 %v263, %v303
      %v323 = vmul.f32 %v266, %v303
      %v324 = vmul.f32 %v269, %v303
      %v325 = vmul.f32 %v272, %v303
      %v326 = vmul.f32 %v275, %v303
      %v327 = vmul.f32 %v278, %v303
      %v328 = vmul.f32 %v281, %v303
      %v329 = vmul.f32 %v284, %v303
      %v330 = vmul.f32 %v287, %v303
      %v331 = vmul.f32 %v290, %v303
      %v332 = vmul.f32 %v293, %v303
      %v333 = vmul.f32 %v296, %v303
      %v334 = vmul.f32 %v299, %v303
      %v335 = vmul.f32 %v302, %v303
      %v336 = vsub.f32 %v174, %v304
      %v337 = vsub.f32 %v175, %v305
      %v338 = vsub.f32 %v176, %v306
      %v339 = vsub.f32 %v177, %v307
      %v340 = vsub.f32 %v178, %v308
      %v341 = vsub.f32 %v179, %v309
      %v342 = vsub.f32 %v180, %v310
      %v343 = vsub.f32 %v181, %v311
      %v344 = vsub.f32 %v182, %v312
      %v345 = vsub.f32 %v183, %v313
      %v346 = vsub.f32 %v184, %v314
      %v347 = vsub.f32 %v185, %v315
      %v348 = vsub.f32 %v186, %v316
      %v349 = vsub.f32 %v187, %v317
      %v350 = vsub.f32 %v188, %v318
      %v351 = vsub.f32 %v189, %v319
      %v352 = vsub.f32 %v190, %v320
      %v353 = vsub.f32 %v191, %v321
      %v354 = vsub.f32 %v192, %v322
      %v355 = vsub.f32 %v193, %v323
      %v356 = vsub.f32 %v194, %v324
      %v357 = vsub.f32 %v195, %v325
      %v358 = vsub.f32 %v196, %v326
      %v359 = vsub.f32 %v197, %v327
      %v360 = vsub.f32 %v198, %v328
      %v361 = vsub.f32 %v199, %v329
      %v362 = vsub.f32 %v200, %v330
      %v363 = vsub.f32 %v201, %v331
      %v364 = vsub.f32 %v202, %v332
      %v365 = vsub.f32 %v203, %v333
      %v366 = vsub.f32 %v204, %v334
      %v367 = vsub.f32 %v205, %v335
      %v368 = vmul.f32 %v336, %v336
      %v369 = vmul.f32 %v337, %v337
      %v370 = vmul.f32 %v338, %v338
      %v371 = vmul.f32 %v339, %v339
      %v372 = vmul.f32 %v340, %v340
      %v373 = vmul.f32 %v341, %v341
      %v374 = vmul.f32 %v342, %v342
      %v375 = vmul.f32 %v343, %v343
      %v376 = vmul.f32 %v344, %v344
      %v377 = vmul.f32 %v345, %v345
      %v378 = vmul.f32 %v346, %v346
      %v379 = vmul.f32 %v347, %v347
      %v380 = vmul.f32 %v348, %v348
      %v381 = vmul.f32 %v349, %v349
      %v382 = vmul.f32 %v350, %v350
      %v383 = vmul.f32 %v351, %v351
      %v384 = vmul.f32 %v352, %v352
      %v385 = vmul.f32 %v353, %v353
      %v386 = vmul.f32 %v354, %v354
      %v387 = vmul.f32 %v355, %v355
      %v388 = vmul.f32 %v356, %v356
      %v389 = vmul.f32 %v357, %v357
      %v390 = vmul.f32 %v358, %v358
      %v391 = vmul.f32 %v359, %v359
      %v392 = vmul.f32 %v360, %v360
      %v393 = vmul.f32 %v361, %v361
      %v394 = vmul.f32 %v362, %v362
      %v395 = vmul.f32 %v363, %v363
      %v396 = vmul.f32 %v364, %v364
      %v397 = vmul.f32 %v365, %v365
      %v398 = vmul.f32 %v366, %v366
      %v399 = vmul.f32 %v367, %v367
      %v400 = vsel %vm206, %v368, 0.0
      %401 = vadd.xlane.f32.xlu0 %v400
      %v402 = vpop.xlane.xlu0 %401
      %v403 = vsel %vm206, %v369, 0.0
      %404 = vadd.xlane.f32.xlu0 %v403
      %v405 = vpop.xlane.xlu0 %404
      %v406 = vsel %vm206, %v370, 0.0
      %407 = vadd.xlane.f32.xlu0 %v406
      %v408 = vpop.xlane.xlu0 %407
      %v409 = vsel %vm206, %v371, 0.0
      %410 = vadd.xlane.f32.xlu0 %v409
      %v411 = vpop.xlane.xlu0 %410
      %v412 = vsel %vm206, %v372, 0.0
      %413 = vadd.xlane.f32.xlu0 %v412
      %v414 = vpop.xlane.xlu0 %413
      %v415 = vsel %vm206, %v373, 0.0
      %416 = vadd.xlane.f32.xlu0 %v415
      %v417 = vpop.xlane.xlu0 %416
      %v418 = vsel %vm206, %v374, 0.0
      %419 = vadd.xlane.f32.xlu0 %v418
      %v420 = vpop.xlane.xlu0 %419
      %v421 = vsel %vm206, %v375, 0.0
      %422 = vadd.xlane.f32.xlu0 %v421
      %v423 = vpop.xlane.xlu0 %422
      %v424 = vsel %vm206, %v376, 0.0
      %425 = vadd.xlane.f32.xlu0 %v424
      %v426 = vpop.xlane.xlu0 %425
      %v427 = vsel %vm206, %v377, 0.0
      %428 = vadd.xlane.f32.xlu0 %v427
      %v429 = vpop.xlane.xlu0 %428
      %v430 = vsel %vm206, %v378, 0.0
      %431 = vadd.xlane.f32.xlu0 %v430
      %v432 = vpop.xlane.xlu0 %431
      %v433 = vsel %vm206, %v379, 0.0
      %434 = vadd.xlane.f32.xlu0 %v433
      %v435 = vpop.xlane.xlu0 %434
      %v436 = vsel %vm206, %v380, 0.0
      %437 = vadd.xlane.f32.xlu0 %v436
      %v438 = vpop.xlane.xlu0 %437
      %v439 = vsel %vm206, %v381, 0.0
      %440 = vadd.xlane.f32.xlu0 %v439
      %v441 = vpop.xlane.xlu0 %440
      %v442 = vsel %vm206, %v382, 0.0
      %443 = vadd.xlane.f32.xlu0 %v442
      %v444 = vpop.xlane.xlu0 %443
      %v445 = vsel %vm206, %v383, 0.0
      %446 = vadd.xlane.f32.xlu0 %v445
      %v447 = vpop.xlane.xlu0 %446
      %v448 = vsel %vm206, %v384, 0.0
      %449 = vadd.xlane.f32.xlu0 %v448
      %v450 = vpop.xlane.xlu0 %449
      %v451 = vsel %vm206, %v385, 0.0
      %452 = vadd.xlane.f32.xlu0 %v451
      %v453 = vpop.xlane.xlu0 %452
      %v454 = vsel %vm206, %v386, 0.0
      %455 = vadd.xlane.f32.xlu0 %v454
      %v456 = vpop.xlane.xlu0 %455
      %v457 = vsel %vm206, %v387, 0.0
      %458 = vadd.xlane.f32.xlu0 %v457
      %v459 = vpop.xlane.xlu0 %458
      %v460 = vsel %vm206, %v388, 0.0
      %461 = vadd.xlane.f32.xlu0 %v460
      %v462 = vpop.xlane.xlu0 %461
      %v463 = vsel %vm206, %v389, 0.0
      %464 = vadd.xlane.f32.xlu0 %v463
      %v465 = vpop.xlane.xlu0 %464
      %v466 = vsel %vm206, %v390, 0.0
      %467 = vadd.xlane.f32.xlu0 %v466
      %v468 = vpop.xlane.xlu0 %467
      %v469 = vsel %vm206, %v391, 0.0
      %470 = vadd.xlane.f32.xlu0 %v469
      %v471 = vpop.xlane.xlu0 %470
      %v472 = vsel %vm206, %v392, 0.0
      %473 = vadd.xlane.f32.xlu0 %v472
      %v474 = vpop.xlane.xlu0 %473
      %v475 = vsel %vm206, %v393, 0.0
      %476 = vadd.xlane.f32.xlu0 %v475
      %v477 = vpop.xlane.xlu0 %476
      %v478 = vsel %vm206, %v394, 0.0
      %479 = vadd.xlane.f32.xlu0 %v478
      %v480 = vpop.xlane.xlu0 %479
      %v481 = vsel %vm206, %v395, 0.0
      %482 = vadd.xlane.f32.xlu0 %v481
      %v483 = vpop.xlane.xlu0 %482
      %v484 = vsel %vm206, %v396, 0.0
      %485 = vadd.xlane.f32.xlu0 %v484
      %v486 = vpop.xlane.xlu0 %485
      %v487 = vsel %vm206, %v397, 0.0
      %488 = vadd.xlane.f32.xlu0 %v487
      %v489 = vpop.xlane.xlu0 %488
      %v490 = vsel %vm206, %v398, 0.0
      %491 = vadd.xlane.f32.xlu0 %v490
      %v492 = vpop.xlane.xlu0 %491
      %v493 = vsel %vm206, %v399, 0.0
      %494 = vadd.xlane.f32.xlu0 %v493
      %v495 = vpop.xlane.xlu0 %494
      %v496 = vmul.f32 %v402, %v303
      %v497 = vmul.f32 %v405, %v303
      %v498 = vmul.f32 %v408, %v303
      %v499 = vmul.f32 %v411, %v303
      %v500 = vmul.f32 %v414, %v303
      %v501 = vmul.f32 %v417, %v303
      %v502 = vmul.f32 %v420, %v303
      %v503 = vmul.f32 %v423, %v303
      %v504 = vmul.f32 %v426, %v303
      %v505 = vmul.f32 %v429, %v303
      %v506 = vmul.f32 %v432, %v303
      %v507 = vmul.f32 %v435, %v303
      %v508 = vmul.f32 %v438, %v303
      %v509 = vmul.f32 %v441, %v303
      %v510 = vmul.f32 %v444, %v303
      %v511 = vmul.f32 %v447, %v303
      %v512 = vmul.f32 %v450, %v303
      %v513 = vmul.f32 %v453, %v303
      %v514 = vmul.f32 %v456, %v303
      %v515 = vmul.f32 %v459, %v303
      %v516 = vmul.f32 %v462, %v303
      %v517 = vmul.f32 %v465, %v303
      %v518 = vmul.f32 %v468, %v303
      %v519 = vmul.f32 %v471, %v303
      %v520 = vmul.f32 %v474, %v303
      %v521 = vmul.f32 %v477, %v303
      %v522 = vmul.f32 %v480, %v303
      %v523 = vmul.f32 %v483, %v303
      %v524 = vmul.f32 %v486, %v303
      %v525 = vmul.f32 %v489, %v303
      %v526 = vmul.f32 %v492, %v303
      %v527 = vmul.f32 %v495, %v303
      %v528 = vadd.f32 %v496, 1e-05
      %v529 = vadd.f32 %v497, 1e-05
      %v530 = vadd.f32 %v498, 1e-05
      %v531 = vadd.f32 %v499, 1e-05
      %v532 = vadd.f32 %v500, 1e-05
      %v533 = vadd.f32 %v501, 1e-05
      %v534 = vadd.f32 %v502, 1e-05
      %v535 = vadd.f32 %v503, 1e-05
      %v536 = vadd.f32 %v504, 1e-05
      %v537 = vadd.f32 %v505, 1e-05
      %v538 = vadd.f32 %v506, 1e-05
      %v539 = vadd.f32 %v507, 1e-05
      %v540 = vadd.f32 %v508, 1e-05
      %v541 = vadd.f32 %v509, 1e-05
      %v542 = vadd.f32 %v510, 1e-05
      %v543 = vadd.f32 %v511, 1e-05
      %v544 = vadd.f32 %v512, 1e-05
      %v545 = vadd.f32 %v513, 1e-05
      %v546 = vadd.f32 %v514, 1e-05
      %v547 = vadd.f32 %v515, 1e-05
      %v548 = vadd.f32 %v516, 1e-05
      %v549 = vadd.f32 %v517, 1e-05
      %v550 = vadd.f32 %v518, 1e-05
      %v551 = vadd.f32 %v519, 1e-05
      %v552 = vadd.f32 %v520, 1e-05
      %v553 = vadd.f32 %v521, 1e-05
      %v554 = vadd.f32 %v522, 1e-05
      %v555 = vadd.f32 %v523, 1e-05
      %v556 = vadd.f32 %v524, 1e-05
      %v557 = vadd.f32 %v525, 1e-05
      %v558 = vadd.f32 %v526, 1e-05
      %v559 = vadd.f32 %v527, 1e-05
      %v560 = vrsqrt.pop %v528
      %v561 = vrsqrt.pop %v529
      %v562 = vrsqrt.pop %v530
      %v563 = vrsqrt.pop %v531
      %v564 = vrsqrt.pop %v532
      %v565 = vrsqrt.pop %v533
      %v566 = vrsqrt.pop %v534
      %v567 = vrsqrt.pop %v535
      %v568 = vrsqrt.pop %v536
      %v569 = vrsqrt.pop %v537
      %v570 = vrsqrt.pop %v538
      %v571 = vrsqrt.pop %v539
      %v572 = vrsqrt.pop %v540
      %v573 = vrsqrt.pop %v541
      %v574 = vrsqrt.pop %v542
      %v575 = vrsqrt.pop %v543
      %v576 = vrsqrt.pop %v544
      %v577 = vrsqrt.pop %v545
      %v578 = vrsqrt.pop %v546
      %v579 = vrsqrt.pop %v547
      %v580 = vrsqrt.pop %v548
      %v581 = vrsqrt.pop %v549
      %v582 = vrsqrt.pop %v550
      %v583 = vrsqrt.pop %v551
      %v584 = vrsqrt.pop %v552
      %v585 = vrsqrt.pop %v553
      %v586 = vrsqrt.pop %v554
      %v587 = vrsqrt.pop %v555
      %v588 = vrsqrt.pop %v556
      %v589 = vrsqrt.pop %v557
      %v590 = vrsqrt.pop %v558
      %v591 = vrsqrt.pop %v559
      %v592 = vmul.f32 %v336, %v560
      %v593 = vmul.f32 %v337, %v561
      %v594 = vmul.f32 %v338, %v562
      %v595 = vmul.f32 %v339, %v563
      %v596 = vmul.f32 %v340, %v564
      %v597 = vmul.f32 %v341, %v565
      %v598 = vmul.f32 %v342, %v566
      %v599 = vmul.f32 %v343, %v567
      %v600 = vmul.f32 %v344, %v568
      %v601 = vmul.f32 %v345, %v569
      %v602 = vmul.f32 %v346, %v570
      %v603 = vmul.f32 %v347, %v571
      %v604 = vmul.f32 %v348, %v572
      %v605 = vmul.f32 %v349, %v573
      %v606 = vmul.f32 %v350, %v574
      %v607 = vmul.f32 %v351, %v575
      %v608 = vmul.f32 %v352, %v576
      %v609 = vmul.f32 %v353, %v577
      %v610 = vmul.f32 %v354, %v578
      %v611 = vmul.f32 %v355, %v579
      %v612 = vmul.f32 %v356, %v580
      %v613 = vmul.f32 %v357, %v581
      %v614 = vmul.f32 %v358, %v582
      %v615 = vmul.f32 %v359, %v583
      %v616 = vmul.f32 %v360, %v584
      %v617 = vmul.f32 %v361, %v585
      %v618 = vmul.f32 %v362, %v586
      %v619 = vmul.f32 %v363, %v587
      %v620 = vmul.f32 %v364, %v588
      %v621 = vmul.f32 %v365, %v589
      %v622 = vmul.f32 %v366, %v590
      %v623 = vmul.f32 %v367, %v591
      %v624 = vld [vmem:[%s1] sm:$0x1]
      %v626 = vlaneseq
      %v627 = vshrl.u32 %v626, 7
      %v628 = vsub.s32 0, %v627
      %v629 = vrot.slane %v624, %v628
      %v631 = vmul.f32 %v592, %v629
      %v632 = vmul.f32 %v593, %v629
      %v633 = vmul.f32 %v594, %v629
      %v634 = vmul.f32 %v595, %v629
      %v635 = vmul.f32 %v596, %v629
      %v636 = vmul.f32 %v597, %v629
      %v637 = vmul.f32 %v598, %v629
      %v638 = vmul.f32 %v599, %v629
      %v639 = vmul.f32 %v600, %v629
      %v640 = vmul.f32 %v601, %v629
      %v641 = vmul.f32 %v602, %v629
      %v642 = vmul.f32 %v603, %v629
      %v643 = vmul.f32 %v604, %v629
      %v644 = vmul.f32 %v605, %v629
      %v645 = vmul.f32 %v606, %v629
      %v646 = vmul.f32 %v607, %v629
      %v647 = vmul.f32 %v608, %v629
      %v648 = vmul.f32 %v609, %v629
      %v649 = vmul.f32 %v610, %v629
      %v650 = vmul.f32 %v611, %v629
      %v651 = vmul.f32 %v612, %v629
      %v652 = vmul.f32 %v613, %v629
      %v653 = vmul.f32 %v614, %v629
      %v654 = vmul.f32 %v615, %v629
      %v655 = vmul.f32 %v616, %v629
      %v656 = vmul.f32 %v617, %v629
      %v657 = vmul.f32 %v618, %v629
      %v658 = vmul.f32 %v619, %v629
      %v659 = vmul.f32 %v620, %v629
      %v660 = vmul.f32 %v621, %v629
      %v661 = vmul.f32 %v622, %v629
      %v662 = vmul.f32 %v623, %v629
      %v663 = vld [vmem:[%s2] sm:$0x1]
      %v665 = vlaneseq
      %v666 = vshrl.u32 %v665, 7
      %v667 = vsub.s32 0, %v666
      %v668 = vrot.slane %v663, %v667
      %v670 = vadd.f32 %v631, %v668
      %v671 = vadd.f32 %v632, %v668
      %v672 = vadd.f32 %v633, %v668
      %v673 = vadd.f32 %v634, %v668
      %v674 = vadd.f32 %v635, %v668
      %v675 = vadd.f32 %v636, %v668
      %v676 = vadd.f32 %v637, %v668
      %v677 = vadd.f32 %v638, %v668
      %v678 = vadd.f32 %v639, %v668
      %v679 = vadd.f32 %v640, %v668
      %v680 = vadd.f32 %v641, %v668
      %v681 = vadd.f32 %v642, %v668
      %v682 = vadd.f32 %v643, %v668
      %v683 = vadd.f32 %v644, %v668
      %v684 = vadd.f32 %v645, %v668
      %v685 = vadd.f32 %v646, %v668
      %v686 = vadd.f32 %v647, %v668
      %v687 = vadd.f32 %v648, %v668
      %v688 = vadd.f32 %v649, %v668
      %v689 = vadd.f32 %v650, %v668
      %v690 = vadd.f32 %v651, %v668
      %v691 = vadd.f32 %v652, %v668
      %v692 = vadd.f32 %v653, %v668
      %v693 = vadd.f32 %v654, %v668
      %v694 = vadd.f32 %v655, %v668
      %v695 = vadd.f32 %v656, %v668
      %v696 = vadd.f32 %v657, %v668
      %v697 = vadd.f32 %v658, %v668
      %v698 = vadd.f32 %v659, %v668
      %v699 = vadd.f32 %v660, %v668
      %v700 = vadd.f32 %v661, %v668
      %v701 = vadd.f32 %v662, %v668
      %702 = vst.msk [vmem:[%s172] sm:$0xff] %vm206, %v670
      %703 = vst.msk [vmem:[%s172 + $0x8] sm:$0xff] %vm206, %v671
      %704 = vst.msk [vmem:[%s172 + $0x10] sm:$0xff] %vm206, %v672
      %705 = vst.msk [vmem:[%s172 + $0x18] sm:$0xff] %vm206, %v673
      %706 = vst.msk [vmem:[%s172 + $0x20] sm:$0xff] %vm206, %v674
      %707 = vst.msk [vmem:[%s172 + $0x28] sm:$0xff] %vm206, %v675
      %708 = vst.msk [vmem:[%s172 + $0x30] sm:$0xff] %vm206, %v676
      %709 = vst.msk [vmem:[%s172 + $0x38] sm:$0xff] %vm206, %v677
      %710 = vst.msk [vmem:[%s172 + $0x40] sm:$0xff] %vm206, %v678
      %711 = vst.msk [vmem:[%s172 + $0x48] sm:$0xff] %vm206, %v679
      %712 = vst.msk [vmem:[%s172 + $0x50] sm:$0xff] %vm206, %v680
      %713 = vst.msk [vmem:[%s172 + $0x58] sm:$0xff] %vm206, %v681
      %714 = vst.msk [vmem:[%s172 + $0x60] sm:$0xff] %vm206, %v682
      %715 = vst.msk [vmem:[%s172 + $0x68] sm:$0xff] %vm206, %v683
      %716 = vst.msk [vmem:[%s172 + $0x70] sm:$0xff] %vm206, %v684
      %717 = vst.msk [vmem:[%s172 + $0x78] sm:$0xff] %vm206, %v685
      %718 = vst.msk [vmem:[%s172 + $0x80] sm:$0xff] %vm206, %v686
      %719 = vst.msk [vmem:[%s172 + $0x88] sm:$0xff] %vm206, %v687
      %720 = vst.msk [vmem:[%s172 + $0x90] sm:$0xff] %vm206, %v688
      %721 = vst.msk [vmem:[%s172 + $0x98] sm:$0xff] %vm206, %v689
      %722 = vst.msk [vmem:[%s172 + $0xa0] sm:$0xff] %vm206, %v690
      %723 = vst.msk [vmem:[%s172 + $0xa8] sm:$0xff] %vm206, %v691
      %724 = vst.msk [vmem:[%s172 + $0xb0] sm:$0xff] %vm206, %v692
      %725 = vst.msk [vmem:[%s172 + $0xb8] sm:$0xff] %vm206, %v693
      %726 = vst.msk [vmem:[%s172 + $0xc0] sm:$0xff] %vm206, %v694
      %727 = vst.msk [vmem:[%s172 + $0xc8] sm:$0xff] %vm206, %v695
      %728 = vst.msk [vmem:[%s172 + $0xd0] sm:$0xff] %vm206, %v696
      %729 = vst.msk [vmem:[%s172 + $0xd8] sm:$0xff] %vm206, %v697
      %730 = vst.msk [vmem:[%s172 + $0xe0] sm:$0xff] %vm206, %v698
      %731 = vst.msk [vmem:[%s172 + $0xe8] sm:$0xff] %vm206, %v699
      %732 = vst.msk [vmem:[%s172 + $0xf0] sm:$0xff] %vm206, %v700
      %733 = vst.msk [vmem:[%s172 + $0xf8] sm:$0xff] %vm206, %v701
      %s734 = smul.u32 32, %s14
      %p735 = scmp.lt.s32.totalorder %s734, 63
      %s736 = scalar_select %p735, %s734, 63
      %s737 = smul.addr %s736, 8
      %s738 = scalar_lea.vmem %s3, %s737
      // Predicated region
      $region33: #{tpu_custom_call.1} parent=31 // pred_check
        %p739 = pneg %p100
      $region34: #{tpu_custom_call.1} parent=31 // pred_check_branch
        %741 = sbr.rel (%p739) target = $region36
      $region35: #{tpu_custom_call.1} parent=31 // pred_region
        %s742 = smul.u32 32, %s14
      $region36: #{tpu_custom_call.1} parent=31 // pred_fallthru
        _
    $region32: #{tpu_custom_call.1} parent=5 // pred_fallthru
      _
    %p743 = scmp.le.s32.totalorder 2, %s9
    // Predicated region
    $region37: #{tpu_custom_call.1} parent=5 // pred_check
      %p744 = pneg %p743
    $region38: #{tpu_custom_call.1} parent=5 // pred_check_branch
      %746 = sbr.rel (%p744) target = $region40
    $region39: #{tpu_custom_call.1} parent=5 // pred_region
      %s747 = ssub.s32 %s9, 2
      // Predicated region
      $region41: #{tpu_custom_call.1} parent=39 // pred_check
        %p748 = pneg %p106
      $region42: #{tpu_custom_call.1} parent=39 // pred_check_branch
        %750 = sbr.rel (%p748) target = $region44
      $region43: #{tpu_custom_call.1} parent=39 // pred_region
        %s751 = smul.u32 32, %s15
        %p752 = scmp.lt.s32.totalorder %s751, 63
        %s753 = scalar_select %p752, %s751, 63
        %s754 = smul.addr %s753, 8
        %s755 = scalar_lea.vmem %s3, %s754
      $region44: #{tpu_custom_call.1} parent=39 // pred_fallthru
        _
    $region40: #{tpu_custom_call.1} parent=5 // pred_fallthru
      _
  $region6: #{tpu_custom_call.1} parent=0 // loop_footer
    %s13 = sadd.s32 1, %s9
  $region7: #{tpu_custom_call.1} parent=0 // loop_footer_branch
    %8 = sbr.rel target = $region3
  $region8: #{tpu_custom_call.1} parent=0 // loop_exit
    _

</llo_original>
